<compile_context>
chip_gen: v6e
topology: v6e:2x2x1
jax: 0.10.0
libtpu: 0.0.40
codegen_flags: <defaults>
</compile_context>

<pallas_src>
import jax
import jax.numpy as jnp
from jax.experimental import pallas as pl
from jax.experimental.pallas import tpu as pltpu


def transition_kernel(w_ref, p_ref, o_ref):
    """Fused conv(+folded BN) -> ReLU -> 2x2 max-pool for one tile of pooled pixels.

    w_ref : (Cout, Kpad)   BN-folded conv weights in im2col layout (rows kh,kw,c; K zero-padded)
    p_ref : (Kpad, 4*TM)   im2col patches; 4 contiguous lane blocks of TM columns, one per
                           2x2 pool quadrant (q = dh*2+dw); columns within a block are
                           consecutive flat pooled pixels (n, hh, wh)
    o_ref : (Cout, TM)     pooled output tile, columns = flat pooled pixels (lane-dense)
    """
    m = o_ref.shape[1]

    # Single MXU matmul: all 9 taps x all channels x all pooled pixels of this tile.
    conv = jnp.dot(w_ref[...], p_ref[...], preferred_element_type=jnp.float32)  # (Cout, 4*TM)

    # MaxPool2d(2,2) == elementwise max over the four quadrant blocks.  These are
    # 128-aligned static lane slices of a register-resident value -> no scratch,
    # no strided reloads, no relayouts.
    q00 = conv[:, 0 * m:1 * m]
    q01 = conv[:, 1 * m:2 * m]
    q10 = conv[:, 2 * m:3 * m]
    q11 = conv[:, 3 * m:4 * m]
    pooled = jnp.maximum(jnp.maximum(q00, q01), jnp.maximum(q10, q11))

    # ReLU commutes with max-pool; Dropout2d(p=0.1) is identity in eval mode.
    o_ref[...] = jnp.maximum(pooled, 0.0).astype(o_ref.dtype)


def _pick_tile(M, Kpad, target_rhs_bytes=2 << 20):
    """Largest 128-multiple tile of pooled pixels that divides M and keeps the
    per-step im2col RHS (Kpad x 4*TM f32) around `target_rhs_bytes`."""
    if M % 128 != 0:
        return M                      # single (full) tile; stores may be lane-masked
    cap = max(128, (target_rhs_bytes // (Kpad * 4 * 4)) // 128 * 128)
    if M <= cap:
        return M
    best, t = 128, 128
    while t <= cap:
        if M % t == 0:
            best = t
        t += 128
    return best


def transition_forward(x_nchw, w_hwio, gamma, beta, running_mean, running_var,
                       eps=1e-5):
    """Pallas implementation of Transition.forward (eval mode). Returns NCHW float32."""
    N, C, H, W = x_nchw.shape
    Cout = w_hwio.shape[-1]
    assert H % 2 == 0 and W % 2 == 0, "MaxPool2d(2,2) requires even H, W"
    Hh, Wh = H // 2, W // 2
    M = N * Hh * Wh                       # total pooled pixels = store lane axis

    f32 = jnp.float32
    x = x_nchw.astype(f32)

    # ---- fold BatchNorm2d (running stats) into the conv weights ------------------
    scale = gamma.astype(f32) * jax.lax.rsqrt(running_var.astype(f32) + eps)    # (C,)
    shift = beta.astype(f32) - running_mean.astype(f32) * scale                 # (C,)
    w = w_hwio.astype(f32)                                                      # (3,3,C,Cout)
    Caug = C + 1
    w_scaled = w * scale[None, None, :, None]                                   # (3,3,C,Cout)
    w_shift = jnp.einsum('hwco,c->hwo', w, shift)[:, :, None, :]                # (3,3,1,Cout)
    w_aug = jnp.concatenate([w_scaled, w_shift], axis=2)                        # (3,3,Caug,Cout)
    K = 9 * Caug
    Kpad = ((K + 7) // 8) * 8
    w_mat = jnp.pad(w_aug.reshape(K, Cout).T, ((0, 0), (0, Kpad - K)))          # (Cout, Kpad)

    TM = _pick_tile(M, Kpad)
    num_tiles = M // TM

    # ---- build the im2col RHS once, grouped by (tile, 2x2 pool quadrant) ---------
    # Augment x with a ones channel (carries the BN shift through zero-padding),
    # then zero-pad spatially (= the conv's padding=1 applied to bn(x)).
    xa = jnp.concatenate([x, jnp.ones((N, 1, H, W), f32)], axis=1)              # (N,Caug,H,W)
    xp = jnp.pad(xa, ((0, 0), (0, 0), (1, 1), (1, 1)))                          # (N,Caug,H+2,W+2)
    taps = jnp.stack([xp[:, :, kh:kh + H, kw:kw + W]
                      for kh in range(3) for kw in range(3)], axis=0)           # (9,N,Caug,H,W)
    quads = jnp.stack([taps[..., 0::2, 0::2], taps[..., 0::2, 1::2],
                       taps[..., 1::2, 0::2], taps[..., 1::2, 1::2]], axis=0)   # (4,9,N,Caug,Hh,Wh)
    p = jnp.transpose(quads, (1, 3, 2, 4, 5, 0))           # (9,Caug,N,Hh,Wh,4)
    p = p.reshape(9, Caug, num_tiles, TM, 4)               # split flat pooled pixels into tiles
    p = jnp.transpose(p, (0, 1, 2, 4, 3))                  # (9,Caug,tile,quad,TM)
    p = p.reshape(K, num_tiles * 4 * TM)
    p = jnp.pad(p, ((0, Kpad - K), (0, 0)))                                     # (Kpad, tiles*4*TM)

    out_flat = pl.pallas_call(
        transition_kernel,
        out_shape=jax.ShapeDtypeStruct((Cout, num_tiles * TM), f32),
        grid_spec=pltpu.PrefetchScalarGridSpec(
            num_scalar_prefetch=0,
            grid=(num_tiles,),
            in_specs=[
                pl.BlockSpec((Cout, Kpad), lambda t: (0, 0)),      # folded weights (resident)
                pl.BlockSpec((Kpad, 4 * TM), lambda t: (0, t)),    # this tile's patches
            ],
            out_specs=pl.BlockSpec((Cout, TM), lambda t: (0, t)),  # lane-dense pooled output
        ),
        compiler_params=pltpu.CompilerParams(
            dimension_semantics=("parallel",)),
    )(w_mat, p)

    # Output columns are consecutive flat pooled pixels (n, hh, wh); back to NCHW.
    return jnp.transpose(out_flat.reshape(Cout, N, Hh, Wh), (1, 0, 2, 3))


def transition_reference(x_nchw, w_hwio, gamma, beta, running_mean, running_var,
                         eps=1e-5):
    """Pure-JAX reference (same eval-mode semantics)."""
    x = x_nchw.astype(jnp.float32)
    scale = gamma / jnp.sqrt(running_var + eps)
    shift = beta - running_mean * scale
    bn = x * scale[None, :, None, None] + shift[None, :, None, None]
    w_oihw = jnp.transpose(w_hwio, (3, 2, 0, 1))
    conv = jax.lax.conv_general_dilated(
        bn, w_oihw, window_strides=(1, 1), padding=((1, 1), (1, 1)),
        dimension_numbers=("NCHW", "OIHW", "NCHW"))
    relu = jnp.maximum(conv, 0.0)
    pooled = jax.lax.reduce_window(relu, -jnp.inf, jax.lax.max,
                                   (1, 1, 2, 2), (1, 1, 2, 2), "VALID")
    return pooled


if __name__ == "__main__":
    # Small shapes consistent with the module: Transition(nChannels=4, nOutChannels=8)
    N, C, Cout, H, W = 2, 4, 8, 16, 16

    key = jax.random.PRNGKey(0)
    kx, kw, kg, kb, km, kv = jax.random.split(key, 6)

    x = jax.random.normal(kx, (N, C, H, W), dtype=jnp.float32)          # NCHW input
    w_hwio = jax.random.normal(kw, (3, 3, C, Cout), dtype=jnp.float32) * 0.1
    gamma = jax.random.uniform(kg, (C,), minval=0.5, maxval=1.5, dtype=jnp.float32)
    beta = jax.random.normal(kb, (C,), dtype=jnp.float32) * 0.1
    running_mean = jax.random.normal(km, (C,), dtype=jnp.float32) * 0.1
    running_var = jax.random.uniform(kv, (C,), minval=0.5, maxval=1.5,
                                     dtype=jnp.float32)

    fwd = jax.jit(transition_forward)    # fuses the wrapper-side BN-fold / im2col build
    out = fwd(x, w_hwio, gamma, beta, running_mean, running_var)
    out = jax.block_until_ready(out)

    ref = transition_reference(x, w_hwio, gamma, beta, running_mean, running_var)
    ref = jax.block_until_ready(ref)

    assert out.shape == (N, Cout, H // 2, W // 2), out.shape
    assert jnp.allclose(out, ref, rtol=1e-4, atol=1e-4), (
        float(jnp.max(jnp.abs(out - ref))))

    print("KERNEL_OK")
</pallas_src>

<mosaic_0001>
module attributes {stable_mosaic.version = 11 : i64} {
  func.func @transition_kernel(%arg0: i32, %arg1: memref<8x48xf32, #tpu.memory_space<vmem>>, %arg2: memref<48x512xf32, #tpu.memory_space<vmem>>, %arg3: memref<8x128xf32, #tpu.memory_space<vmem>>) attributes {dimension_semantics = [#tpu.dimension_semantics<parallel>], iteration_bounds = array<i64: 1>, scalar_prefetch = 0 : i64, scratch_operands = 0 : i64, tpu.core_type = #tpu.core_type<tc>, window_params = [{pipeline_mode = #tpu.pipeline_mode<synchronous>, transform_indices = @transform_0, window_bounds = array<i64: 8, 48>}, {transform_indices = @transform_1, window_bounds = array<i64: 48, 512>}, {transform_indices = @transform_2, window_bounds = array<i64: 8, 128>}]} {
    %c0 = arith.constant 0 : index
    %c0_0 = arith.constant 0 : index
    %0 = vector.load %arg1[%c0, %c0_0] : memref<8x48xf32, #tpu.memory_space<vmem>>, vector<8x48xf32>
    %c0_1 = arith.constant 0 : index
    %c0_2 = arith.constant 0 : index
    %1 = vector.load %arg2[%c0_1, %c0_2] : memref<48x512xf32, #tpu.memory_space<vmem>>, vector<48x512xf32>
    %cst = arith.constant dense<0.000000e+00> : vector<8x512xf32>
    %2 = tpu.matmul %0, %1, %cst {dimension_numbers = #tpu.dot_dimension_numbers<[1], [0], [0], [1], [0, 0, 1, 1], [], []>} : vector<8x48xf32>, vector<48x512xf32>, vector<8x512xf32> -> vector<8x512xf32>
    %3 = vector.extract_strided_slice %2 {offsets = [0, 0], sizes = [8, 128], strides = [1, 1]} : vector<8x512xf32> to vector<8x128xf32>
    %4 = vector.extract_strided_slice %2 {offsets = [0, 128], sizes = [8, 128], strides = [1, 1]} : vector<8x512xf32> to vector<8x128xf32>
    %5 = vector.extract_strided_slice %2 {offsets = [0, 256], sizes = [8, 128], strides = [1, 1]} : vector<8x512xf32> to vector<8x128xf32>
    %6 = vector.extract_strided_slice %2 {offsets = [0, 384], sizes = [8, 128], strides = [1, 1]} : vector<8x512xf32> to vector<8x128xf32>
    %7 = arith.maximumf %3, %4 : vector<8x128xf32>
    %8 = arith.maximumf %5, %6 : vector<8x128xf32>
    %9 = arith.maximumf %7, %8 : vector<8x128xf32>
    %cst_3 = arith.constant 0.000000e+00 : f32
    %10 = vector.broadcast %cst_3 : f32 to vector<8x128xf32>
    %11 = arith.maximumf %9, %10 : vector<8x128xf32>
    %c0_4 = arith.constant 0 : index
    %c0_5 = arith.constant 0 : index
    %12 = vector.load %arg3[%c0_4, %c0_5] : memref<8x128xf32, #tpu.memory_space<vmem>>, vector<8x128xf32>
    tpu.vector_store %arg3[%c0_4, %c0_5], %11 {strides = array<i32>} : memref<8x128xf32, #tpu.memory_space<vmem>>, vector<8x128xf32>,
    return
  }
  func.func @transform_0(%arg0: i32) -> (i32, i32) {
    %c0_i32 = arith.constant 0 : i32
    %c0_i32_0 = arith.constant 0 : i32
    %c0_i32_1 = arith.constant 0 : i32
    return %c0_i32, %c0_i32_0 : i32, i32
  }
  func.func @transform_1(%arg0: i32) -> (i32, i32) {
    %c0_i32 = arith.constant 0 : i32
    %c0_i32_0 = arith.constant 0 : i32
    return %c0_i32, %arg0 : i32, i32
  }
  func.func @transform_2(%arg0: i32) -> (i32, i32) {
    %c0_i32 = arith.constant 0 : i32
    %c0_i32_0 = arith.constant 0 : i32
    return %c0_i32, %arg0 : i32, i32
  }
}

</mosaic_0001>

<llo_original>
// kernel: transition_forward.1
$region0: #{transition_forward.1}
  #allocation0 [shape = 'u32[]', space=smem, size = 0x4, offset = 0x4, fixed_abs, tag = 'smem constant byte address 0x4 - core index']
  #allocation1 [shape = 'u32[144,128]{1,0:T(1,128)}', space=vmem, size = 0x12000, scoped, tag = 'internal scratch']
  %s0 = inlined_call_operand.vmem [shape: f32[8,48], index: 0, kind: input, shape index: {}]
  %s1 = inlined_call_operand.vmem [shape: f32[48,512], index: 1, kind: input, shape index: {}]
  %s2 = inlined_call_operand.vmem [shape: f32[8,128], index: 2, kind: output, shape index: {}]
  %s3 = sld [smem:[#allocation0]]
  $region18: #{transition_forward.1} parent=0
    _
  %s5 = ssub.s32 1, %s3
  %s6 = scalar_select 0, %s5, %s3
  // Predicated region
  $region2: #{transition_forward.1} parent=0 // pred_check
    _
  $region3: #{transition_forward.1} parent=0 // pred_check_branch
    %8 = sbr.rel (0) target = $region5
  $region4: #{transition_forward.1} parent=0 // pred_region
    _
  $region5: #{transition_forward.1} parent=0 // pred_fallthru
    _
  // Predicated region
  $region6: #{transition_forward.1} parent=0 // pred_check
    _
  $region7: #{transition_forward.1} parent=0 // pred_check_branch
    %10 = sbr.rel (0) target = $region9
  $region8: #{transition_forward.1} parent=0 // pred_region
    _
  $region9: #{transition_forward.1} parent=0 // pred_fallthru
    _
  %v11 = vld [vmem:[%s0] sm:$0xff]
  %v12 = vld [vmem:[%s1] sm:$0xff]
  %v13 = vld [vmem:[%s1 + $0x8] sm:$0xff]
  %v14 = vld [vmem:[%s1 + $0x10] sm:$0xff]
  %v15 = vld [vmem:[%s1 + $0x18] sm:$0xff]
  %v16 = vld [vmem:[%s1 + $0x20] sm:$0xff]
  %v17 = vld [vmem:[%s1 + $0x28] sm:$0xff]
  %v18 = vld [vmem:[%s1 + $0x30] sm:$0xff]
  %v19 = vld [vmem:[%s1 + $0x38] sm:$0xff]
  %v20 = vld [vmem:[%s1 + $0x40] sm:$0xff]
  %v21 = vld [vmem:[%s1 + $0x48] sm:$0xff]
  %v22 = vld [vmem:[%s1 + $0x50] sm:$0xff]
  %v23 = vld [vmem:[%s1 + $0x58] sm:$0xff]
  %v24 = vld [vmem:[%s1 + $0x60] sm:$0xff]
  %v25 = vld [vmem:[%s1 + $0x68] sm:$0xff]
  %v26 = vld [vmem:[%s1 + $0x70] sm:$0xff]
  %v27 = vld [vmem:[%s1 + $0x78] sm:$0xff]
  %v28 = vld [vmem:[%s1 + $0x80] sm:$0xff]
  %v29 = vld [vmem:[%s1 + $0x88] sm:$0xff]
  %v30 = vld [vmem:[%s1 + $0x90] sm:$0xff]
  %v31 = vld [vmem:[%s1 + $0x98] sm:$0xff]
  %v32 = vld [vmem:[%s1 + $0xa0] sm:$0xff]
  %v33 = vld [vmem:[%s1 + $0xa8] sm:$0xff]
  %v34 = vld [vmem:[%s1 + $0xb0] sm:$0xff]
  %v35 = vld [vmem:[%s1 + $0xb8] sm:$0xff]
  %vm36 = vcmask 392192
  %v38 = vsel %vm36, %v11, 0
  %40 = vmatprep.subr.mxu0 0.0
  %41 = vmatpush1.msra.mxu0 0.0
  %42 = vmatprep.subr.mxu0 0.0
  %43 = vmatpush1.msra.mxu0 0.0
  %44 = vmatprep.subr.mxu0 0.0
  %45 = vmatpush1.msra.mxu0 0.0
  %46 = vmatprep.subr.mxu0 0.0
  %47 = vmatpush1.msra.mxu0 0.0
  %48 = vmatprep.subr.mxu0 0.0
  %49 = vmatpush1.msra.mxu0 0.0
  %50 = vmatprep.subr.mxu0 0.0
  %51 = vmatpush1.msra.mxu0 0.0
  %52 = vmatprep.subr.mxu0 0.0
  %53 = vmatpush1.msra.mxu0 0.0
  %54 = vmatprep.subr.mxu0 0.0
  %55 = vmatpush1.msra.mxu0 0.0
  %56 = vmatprep.subr.mxu0 0.0
  %57 = vmatpush1.msra.mxu0 0.0
  %58 = vmatprep.subr.mxu0 0.0
  %59 = vmatpush1.msra.mxu0 0.0
  %60 = vmatprep.subr.mxu0 %v33
  %61 = vmatpush1.msra.mxu0 %v32
  %62 = vmatprep.subr.mxu0 %v29
  %63 = vmatpush1.msra.mxu0 %v28
  %64 = vmatprep.subr.mxu0 %v25
  %65 = vmatpush1.msra.mxu0 %v24
  %66 = vmatprep.subr.mxu0 %v21
  %67 = vmatpush1.msra.mxu0 %v20
  %68 = vmatprep.subr.mxu0 %v17
  %69 = vmatpush1.msra.mxu0 %v16
  %70 = vmatprep.subr.mxu0 %v13
  %71 = vmatpush1.msra.mxu0 %v12
  %72 = vmatprep.subr.mxu0 0.0
  %73 = vmatpush2.msra.mxu0 0.0
  %74 = vmatprep.subr.mxu0 0.0
  %75 = vmatpush2.msra.mxu0 0.0
  %76 = vmatprep.subr.mxu0 0.0
  %77 = vmatpush2.msra.mxu0 0.0
  %78 = vmatprep.subr.mxu0 0.0
  %79 = vmatpush2.msra.mxu0 0.0
  %80 = vmatprep.subr.mxu0 0.0
  %81 = vmatpush2.msra.mxu0 0.0
  %82 = vmatprep.subr.mxu0 0.0
  %83 = vmatpush2.msra.mxu0 0.0
  %84 = vmatprep.subr.mxu0 0.0
  %85 = vmatpush2.msra.mxu0 0.0
  %86 = vmatprep.subr.mxu0 0.0
  %87 = vmatpush2.msra.mxu0 0.0
  %88 = vmatprep.subr.mxu0 0.0
  %89 = vmatpush2.msra.mxu0 0.0
  %90 = vmatprep.subr.mxu0 0.0
  %91 = vmatpush2.msra.mxu0 0.0
  %92 = vmatprep.subr.mxu0 0.0
  %93 = vmatpush2.msra.mxu0 0.0
  %94 = vmatprep.subr.mxu0 0.0
  %95 = vmatpush2.msra.mxu0 0.0
  %96 = vmatprep.subr.mxu0 0.0
  %97 = vmatpush2.msra.mxu0 0.0
  %98 = vmatprep.subr.mxu0 0.0
  %99 = vmatpush2.msra.mxu0 0.0
  %100 = vmatprep.subr.mxu0 0.0
  %101 = vmatpush2.msra.mxu0 0.0
  %102 = vmatprep.subr.mxu0 0.0
  %103 = vmatpush2.msra.mxu0 0.0
  %104 = vmatprep.mubr.f32.mxu0 0.0
  %105 = vmatmul.mubr.f32.gmra.mxu0 %v38
  %v106 = vpop.f32.mrf.mxu0
  %v107 = vadd.f32 0.0, %v106
  %v108 = vpop.f32.mrf.mxu0
  %v109 = vadd.f32 0.0, %v108
  %110 = vdwg.mxu0
  %111 = vmatprep.subr.mxu0 0.0
  %112 = vmatpush1.msra.mxu0 0.0
  %113 = vmatprep.subr.mxu0 0.0
  %114 = vmatpush1.msra.mxu0 0.0
  %115 = vmatprep.subr.mxu0 0.0
  %116 = vmatpush1.msra.mxu0 0.0
  %117 = vmatprep.subr.mxu0 0.0
  %118 = vmatpush1.msra.mxu0 0.0
  %119 = vmatprep.subr.mxu0 0.0
  %120 = vmatpush1.msra.mxu0 0.0
  %121 = vmatprep.subr.mxu0 0.0
  %122 = vmatpush1.msra.mxu0 0.0
  %123 = vmatprep.subr.mxu0 0.0
  %124 = vmatpush1.msra.mxu0 0.0
  %125 = vmatprep.subr.mxu0 0.0
  %126 = vmatpush1.msra.mxu0 0.0
  %127 = vmatprep.subr.mxu0 0.0
  %128 = vmatpush1.msra.mxu0 0.0
  %129 = vmatprep.subr.mxu0 0.0
  %130 = vmatpush1.msra.mxu0 0.0
  %131 = vmatprep.subr.mxu0 %v35
  %132 = vmatpush1.msra.mxu0 %v34
  %133 = vmatprep.subr.mxu0 %v31
  %134 = vmatpush1.msra.mxu0 %v30
  %135 = vmatprep.subr.mxu0 %v27
  %136 = vmatpush1.msra.mxu0 %v26
  %137 = vmatprep.subr.mxu0 %v23
  %138 = vmatpush1.msra.mxu0 %v22
  %139 = vmatprep.subr.mxu0 %v19
  %140 = vmatpush1.msra.mxu0 %v18
  %141 = vmatprep.subr.mxu0 %v15
  %142 = vmatpush1.msra.mxu0 %v14
  %143 = vmatprep.subr.mxu0 0.0
  %144 = vmatpush2.msra.mxu0 0.0
  %145 = vmatprep.subr.mxu0 0.0
  %146 = vmatpush2.msra.mxu0 0.0
  %147 = vmatprep.subr.mxu0 0.0
  %148 = vmatpush2.msra.mxu0 0.0
  %149 = vmatprep.subr.mxu0 0.0
  %150 = vmatpush2.msra.mxu0 0.0
  %151 = vmatprep.subr.mxu0 0.0
  %152 = vmatpush2.msra.mxu0 0.0
  %153 = vmatprep.subr.mxu0 0.0
  %154 = vmatpush2.msra.mxu0 0.0
  %155 = vmatprep.subr.mxu0 0.0
  %156 = vmatpush2.msra.mxu0 0.0
  %157 = vmatprep.subr.mxu0 0.0
  %158 = vmatpush2.msra.mxu0 0.0
  %159 = vmatprep.subr.mxu0 0.0
  %160 = vmatpush2.msra.mxu0 0.0
  %161 = vmatprep.subr.mxu0 0.0
  %162 = vmatpush2.msra.mxu0 0.0
  %163 = vmatprep.subr.mxu0 0.0
  %164 = vmatpush2.msra.mxu0 0.0
  %165 = vmatprep.subr.mxu0 0.0
  %166 = vmatpush2.msra.mxu0 0.0
  %167 = vmatprep.subr.mxu0 0.0
  %168 = vmatpush2.msra.mxu0 0.0
  %169 = vmatprep.subr.mxu0 0.0
  %170 = vmatpush2.msra.mxu0 0.0
  %171 = vmatprep.subr.mxu0 0.0
  %172 = vmatpush2.msra.mxu0 0.0
  %173 = vmatprep.subr.mxu0 0.0
  %174 = vmatpush2.msra.mxu0 0.0
  %175 = vmatprep.mubr.f32.mxu0 0.0
  %176 = vmatmul.mubr.f32.gmra.mxu0 %v38
  %v177 = vpop.f32.mrf.mxu0
  %v178 = vadd.f32 0.0, %v177
  %v179 = vpop.f32.mrf.mxu0
  %v180 = vadd.f32 0.0, %v179
  %181 = vdwg.mxu0
  %v182 = vmax.f32 %v107, %v109
  %v183 = vmax.f32 %v178, %v180
  %v184 = vmax.f32 %v182, %v183
  %v185 = vmax.f32 %v184, 0.0
  %186 = vst [vmem:[%s2] sm:$0xff] %v185
  // Predicated region
  $region10: #{transition_forward.1} parent=0 // pred_check
    _
  $region11: #{transition_forward.1} parent=0 // pred_check_branch
    %188 = sbr.rel (0) target = $region13
  $region12: #{transition_forward.1} parent=0 // pred_region
    _
  $region13: #{transition_forward.1} parent=0 // pred_fallthru
    _
  // Predicated region
  $region14: #{transition_forward.1} parent=0 // pred_check
    _
  $region15: #{transition_forward.1} parent=0 // pred_check_branch
    %190 = sbr.rel (0) target = $region17
  $region16: #{transition_forward.1} parent=0 // pred_region
    _
  $region17: #{transition_forward.1} parent=0 // pred_fallthru
    _

</llo_original>
